<compile_context>
chip_gen: v7x
topology: tpu7x:2x2x1
jax: 0.10.0
libtpu: 0.0.40
codegen_flags: <defaults>
</compile_context>

<pallas_src>
from functools import partial

import jax
import jax.numpy as jnp
from jax.experimental import pallas as pl
from jax.experimental.pallas import tpu as pltpu


# ----------------------------------------------------------------------------- kernel
def _dwsep_kernel(x_ref, dwt_ref, masks_ref, pww_ref, pwb_ref, o_ref, *, W):
    # x_ref    : (R_in,  HWp)   R_in = NB*Cin rows (image-major, channel-minor)
    # dwt_ref  : (R_in, 9)      per-row depthwise 3x3 taps (f32, resident)
    # masks_ref: (9, HWp)       0/1 boundary-validity mask per tap (zero padding)
    # pww_ref  : (R_out, R_in)  block-diagonal pointwise weight (bf16, resident)
    # pwb_ref  : (R_out, 1)     folded depthwise bias, pw2 @ dw_bias per image (f32)
    # o_ref    : (R_out, HWp)
    x = x_ref[...].astype(jnp.float32)                       # (R_in, HWp)
    taps = dwt_ref[...].astype(jnp.float32)                  # (R_in, 9) loaded once
    masks = masks_ref[...].astype(jnp.float32)               # (9, HWp)
    HWp = x.shape[1]

    # Depthwise 3x3, stride 1, pad 1.  Each tap = XLU lane-rotation + boundary mask
    # multiply + per-row scalar MAC (VPU, f32).  Center tap needs no roll / no mask.
    acc = x * taps[:, 4:5]                                    # tap (ki=1, kj=1)
    for ki in range(3):
        for kj in range(3):
            if ki == 1 and kj == 1:
                continue
            t = ki * 3 + kj
            src_off = (ki - 1) * W + (kj - 1)                 # x[h+ki-1, w+kj-1]
            rolled = pltpu.roll(x, shift=(-src_off) % HWp, axis=1)
            acc = acc + (rolled * masks[t:t + 1, :]) * taps[:, t:t + 1]

    # Pointwise 1x1 conv on the MXU in bf16 (block-diagonal keeps the NB images in
    # this block independent).  Depthwise bias folded past pw: pw(dw(x)+b) =
    # pw(dw(x)) + pw2@b, added as a per-output-row constant.
    out = jnp.dot(pww_ref[...], acc.astype(jnp.bfloat16),
                  preferred_element_type=jnp.float32)         # (R_out, HWp)
    out = out + pwb_ref[...].astype(jnp.float32)
    o_ref[...] = out.astype(o_ref.dtype)


# ----------------------------------------------------------------------------- tiling
def _tpu_params():
    """Best-effort hardware query; conservative (v7x-safe) defaults on failure."""
    vmem_phys = 64 << 20      # v7x has 64 MiB / TensorCore (v5e/v6e have 128 MiB)
    mxu_k_cap = 256           # one MXU weight-tile K on v6e/v7x
    n_cores = 1
    try:
        vmem_phys = int(pltpu.get_tpu_info().vmem_capacity_bytes)
    except Exception:
        pass
    try:
        kind = jax.devices()[0].device_kind.lower()
        if "v7" in kind:
            n_cores = 2
        if ("v5 lite" in kind) or ("v5e" in kind) or ("v5lite" in kind):
            mxu_k_cap = 128
    except Exception:
        pass
    return vmem_phys, n_cores, mxu_k_cap


def _vmem_footprint(nb, cin, cout, hwp):
    """Rough per-step VMEM bytes: streamed blocks (x2 buffers), resident constants
    (assume x2 in case single-buffering is rejected) and in-kernel f32 temporaries."""
    r_in, r_out = nb * cin, nb * cout
    blocks = 2 * r_in * hwp * 4 + 2 * r_out * hwp * 4
    consts = 2 * (r_in * 128 * 4 + 9 * hwp * 4 + r_out * max(r_in, 128) * 2
                  + r_out * 128 * 4)
    scratch = (3 * r_in + r_out + 9) * hwp * 4
    return blocks + consts + scratch


def _pick_nb(N, cin, cout, hwp, vmem_budget, mxu_k_cap, min_steps):
    """Largest images-per-step NB that is sublane-legal, fits the VMEM budget and one
    MXU weight tile in K; on 2-TC chips prefer leaving >= min_steps grid steps."""
    def valid(nb):
        r_in, r_out = nb * cin, nb * cout
        return ((r_in % 8 == 0) or nb == N) and ((r_out % 8 == 0) or nb == N)

    cands = [d for d in range(1, N + 1) if N % d == 0 and valid(d)]
    if not cands:
        return N  # full-batch block is always legal (sublane-padded rows: perf only)
    fitting = [d for d in cands
               if d * cin <= mxu_k_cap
               and _vmem_footprint(d, cin, cout, hwp) <= vmem_budget]
    if not fitting:
        # TODO(synk): when Cin alone exceeds one MXU K tile, restructure the pointwise
        # as per-image (Cout,Cin)@(Cin,HW) dots instead of the block-diagonal matmul.
        return min(cands)
    pref = [d for d in fitting if (N // d) >= min_steps]
    return max(pref) if pref else max(fitting)


# ----------------------------------------------------------------------------- wrapper
def depthwise_separable_conv(x_nchw, dw_weight, dw_bias, pw_weight):
    """x_nchw: (N, Cin, H, W); dw_weight: (Cin, 1, 3, 3); dw_bias: (Cin,);
    pw_weight: (Cout, Cin, 1, 1).  Returns (N, Cout, H, W)."""
    N, cin, H, W = x_nchw.shape
    cout = pw_weight.shape[0]
    HW = H * W
    HWp = ((HW + 127) // 128) * 128          # lane-dense output (multiple of 128)

    vmem_phys, n_cores, mxu_k_cap = _tpu_params()
    min_steps = 2 if n_cores >= 2 else 1
    NB = _pick_nb(N, cin, cout, HWp, int(0.7 * vmem_phys), mxu_k_cap, min_steps)
    r_in, r_out = NB * cin, NB * cout
    grid = (N // NB,)

    # Activations: free reshape of contiguous NCHW (+ lane pad only if HW % 128 != 0).
    x2 = x_nchw.reshape(N * cin, HW)
    if HWp != HW:
        x2 = jnp.pad(x2, ((0, 0), (0, HWp - HW)))

    # Tiny weight re-layouts (constant-sized, negligible traffic).
    dwt = jnp.tile(dw_weight[:, 0, :, :].reshape(cin, 9).astype(jnp.float32),
                   (NB, 1))                                            # (r_in, 9)
    pw2 = pw_weight[:, :, 0, 0].astype(jnp.float32)                    # (cout, cin)
    bigpw = jnp.kron(jnp.eye(NB, dtype=jnp.float32), pw2).astype(jnp.bfloat16)
    pwb = jnp.tile((pw2 @ dw_bias.astype(jnp.float32)).reshape(cout, 1),
                   (NB, 1))                                            # (r_out, 1)

    # Precomputed 0/1 boundary masks (one row per tap); pad lanes masked to 0.
    pos = jnp.arange(HWp, dtype=jnp.int32)
    inb = pos < HW
    hh = pos // W
    ww = pos % W
    rows = []
    for ki in range(3):
        for kj in range(3):
            mh = (hh + (ki - 1) >= 0) & (hh + (ki - 1) < H)
            mw = (ww + (kj - 1) >= 0) & (ww + (kj - 1) < W)
            rows.append((mh & mw & inb).astype(jnp.float32))
    tap_masks = jnp.stack(rows, axis=0)                                # (9, HWp)

    footprint = _vmem_footprint(NB, cin, cout, HWp)
    vmem_limit = int(min(0.85 * vmem_phys, max(32 << 20, 1.5 * footprint)))

    def build_call(single_buffer_consts):
        def const_spec(shape):
            if single_buffer_consts:
                return pl.BlockSpec(shape, lambda g: (0, 0),
                                    pipeline_mode=pl.Buffered(1))
            return pl.BlockSpec(shape, lambda g: (0, 0))

        return pl.pallas_call(
            partial(_dwsep_kernel, W=W),
            out_shape=jax.ShapeDtypeStruct((N * cout, HWp), x_nchw.dtype),
            grid_spec=pltpu.PrefetchScalarGridSpec(
                num_scalar_prefetch=0,
                grid=grid,
                in_specs=[
                    pl.BlockSpec((r_in, HWp), lambda g: (g, 0)),   # activations
                    const_spec((r_in, 9)),                          # dw taps
                    const_spec((9, HWp)),                           # boundary masks
                    const_spec((r_out, r_in)),                      # pw weight (bf16)
                    const_spec((r_out, 1)),                         # folded dw bias
                ],
                out_specs=pl.BlockSpec((r_out, HWp), lambda g: (g, 0)),
            ),
            compiler_params=pltpu.CompilerParams(
                dimension_semantics=("parallel",),
                vmem_limit_bytes=vmem_limit),
        )

    try:
        out2 = build_call(True)(x2, dwt, tap_masks, bigpw, pwb)
    except Exception:
        # Fallback if single-buffering hint (pl.Buffered(1)) is rejected.
        out2 = build_call(False)(x2, dwt, tap_masks, bigpw, pwb)

    if HWp != HW:
        out2 = out2[:, :HW]
    return out2.reshape(N, cout, H, W)


# ----------------------------------------------------------------------------- reference
def _reference(x_nchw, dw_weight, dw_bias, pw_weight):
    """Plain-JAX reference matching torch semantics (NCHW)."""
    cin = x_nchw.shape[1]
    dn = jax.lax.conv_dimension_numbers(x_nchw.shape, dw_weight.shape,
                                        ("NCHW", "OIHW", "NCHW"))
    dw_out = jax.lax.conv_general_dilated(
        x_nchw, dw_weight, window_strides=(1, 1), padding=((1, 1), (1, 1)),
        dimension_numbers=dn, feature_group_count=cin)
    dw_out = dw_out + dw_bias[None, :, None, None]
    dn2 = jax.lax.conv_dimension_numbers(dw_out.shape, pw_weight.shape,
                                         ("NCHW", "OIHW", "NCHW"))
    return jax.lax.conv_general_dilated(
        dw_out, pw_weight, window_strides=(1, 1), padding=((0, 0), (0, 0)),
        dimension_numbers=dn2)


if __name__ == "__main__":
    N, cin, cout, H, W = 2, 4, 8, 16, 16

    key = jax.random.PRNGKey(0)
    k1, k2, k3, k4 = jax.random.split(key, 4)
    x = jax.random.normal(k1, (N, cin, H, W), dtype=jnp.float32)
    dw_weight = jax.random.normal(k2, (cin, 1, 3, 3), dtype=jnp.float32) * 0.1
    dw_bias = jax.random.normal(k3, (cin,), dtype=jnp.float32) * 0.1
    pw_weight = jax.random.normal(k4, (cout, cin, 1, 1), dtype=jnp.float32) * 0.1

    out = depthwise_separable_conv(x, dw_weight, dw_bias, pw_weight)
    out = jax.block_until_ready(out)

    ref = jax.block_until_ready(_reference(x, dw_weight, dw_bias, pw_weight))
    assert out.shape == (N, cout, H, W)
    # bf16 MXU path -> loosened tolerance (f32 path is the reference).
    assert jnp.allclose(out, ref, atol=2e-2, rtol=2e-2), "mismatch vs reference"

    print("KERNEL_OK")
</pallas_src>

<mosaic_0001>
module attributes {stable_mosaic.version = 11 : i64} {
  func.func @_dwsep_kernel(%arg0: i32, %arg1: memref<8x256xf32, #tpu.memory_space<vmem>>, %arg2: memref<8x9xf32, #tpu.memory_space<vmem>>, %arg3: memref<9x256xf32, #tpu.memory_space<vmem>>, %arg4: memref<16x8xbf16, #tpu.memory_space<vmem>>, %arg5: memref<16x1xf32, #tpu.memory_space<vmem>>, %arg6: memref<16x256xf32, #tpu.memory_space<vmem>>) attributes {dimension_semantics = [#tpu.dimension_semantics<parallel>], iteration_bounds = array<i64: 1>, scalar_prefetch = 0 : i64, scratch_operands = 0 : i64, tpu.core_type = #tpu.core_type<tc>, window_params = [{transform_indices = @transform_0, window_bounds = array<i64: 8, 256>}, {pipeline_mode = #tpu.pipeline_mode<synchronous>, transform_indices = @transform_1, window_bounds = array<i64: 8, 9>}, {pipeline_mode = #tpu.pipeline_mode<synchronous>, transform_indices = @transform_2, window_bounds = array<i64: 9, 256>}, {pipeline_mode = #tpu.pipeline_mode<synchronous>, transform_indices = @transform_3, window_bounds = array<i64: 16, 8>}, {pipeline_mode = #tpu.pipeline_mode<synchronous>, transform_indices = @transform_4, window_bounds = array<i64: 16, 1>}, {transform_indices = @transform_5, window_bounds = array<i64: 16, 256>}]} {
    %c0 = arith.constant 0 : index
    %c0_0 = arith.constant 0 : index
    %0 = vector.load %arg1[%c0, %c0_0] : memref<8x256xf32, #tpu.memory_space<vmem>>, vector<8x256xf32>
    %c0_1 = arith.constant 0 : index
    %c0_2 = arith.constant 0 : index
    %1 = vector.load %arg2[%c0_1, %c0_2] : memref<8x9xf32, #tpu.memory_space<vmem>>, vector<8x9xf32>
    %c0_3 = arith.constant 0 : index
    %c0_4 = arith.constant 0 : index
    %2 = vector.load %arg3[%c0_3, %c0_4] : memref<9x256xf32, #tpu.memory_space<vmem>>, vector<9x256xf32>
    %3 = vector.extract_strided_slice %1 {offsets = [0, 4], sizes = [8, 1], strides = [1, 1]} : vector<8x9xf32> to vector<8x1xf32>
    %4 = vector.broadcast %3 : vector<8x1xf32> to vector<8x256xf32>
    %5 = arith.mulf %0, %4 : vector<8x256xf32>
    %c17_i32 = arith.constant 17 : i32
    %6 = tpu.dynamic_rotate %0 by %c17_i32 dim 1 : vector<8x256xf32>, i32 -> vector<8x256xf32>
    %7 = vector.extract_strided_slice %2 {offsets = [0, 0], sizes = [1, 256], strides = [1, 1]} : vector<9x256xf32> to vector<1x256xf32>
    %8 = vector.broadcast %7 : vector<1x256xf32> to vector<8x256xf32>
    %9 = arith.mulf %6, %8 : vector<8x256xf32>
    %10 = vector.extract_strided_slice %1 {offsets = [0, 0], sizes = [8, 1], strides = [1, 1]} : vector<8x9xf32> to vector<8x1xf32>
    %11 = vector.broadcast %10 : vector<8x1xf32> to vector<8x256xf32>
    %12 = arith.mulf %9, %11 : vector<8x256xf32>
    %13 = arith.addf %5, %12 : vector<8x256xf32>
    %c16_i32 = arith.constant 16 : i32
    %14 = tpu.dynamic_rotate %0 by %c16_i32 dim 1 : vector<8x256xf32>, i32 -> vector<8x256xf32>
    %15 = vector.extract_strided_slice %2 {offsets = [1, 0], sizes = [1, 256], strides = [1, 1]} : vector<9x256xf32> to vector<1x256xf32>
    %16 = vector.broadcast %15 : vector<1x256xf32> to vector<8x256xf32>
    %17 = arith.mulf %14, %16 : vector<8x256xf32>
    %18 = vector.extract_strided_slice %1 {offsets = [0, 1], sizes = [8, 1], strides = [1, 1]} : vector<8x9xf32> to vector<8x1xf32>
    %19 = vector.broadcast %18 : vector<8x1xf32> to vector<8x256xf32>
    %20 = arith.mulf %17, %19 : vector<8x256xf32>
    %21 = arith.addf %13, %20 : vector<8x256xf32>
    %c15_i32 = arith.constant 15 : i32
    %22 = tpu.dynamic_rotate %0 by %c15_i32 dim 1 : vector<8x256xf32>, i32 -> vector<8x256xf32>
    %23 = vector.extract_strided_slice %2 {offsets = [2, 0], sizes = [1, 256], strides = [1, 1]} : vector<9x256xf32> to vector<1x256xf32>
    %24 = vector.broadcast %23 : vector<1x256xf32> to vector<8x256xf32>
    %25 = arith.mulf %22, %24 : vector<8x256xf32>
    %26 = vector.extract_strided_slice %1 {offsets = [0, 2], sizes = [8, 1], strides = [1, 1]} : vector<8x9xf32> to vector<8x1xf32>
    %27 = vector.broadcast %26 : vector<8x1xf32> to vector<8x256xf32>
    %28 = arith.mulf %25, %27 : vector<8x256xf32>
    %29 = arith.addf %21, %28 : vector<8x256xf32>
    %c1_i32 = arith.constant 1 : i32
    %30 = tpu.dynamic_rotate %0 by %c1_i32 dim 1 : vector<8x256xf32>, i32 -> vector<8x256xf32>
    %31 = vector.extract_strided_slice %2 {offsets = [3, 0], sizes = [1, 256], strides = [1, 1]} : vector<9x256xf32> to vector<1x256xf32>
    %32 = vector.broadcast %31 : vector<1x256xf32> to vector<8x256xf32>
    %33 = arith.mulf %30, %32 : vector<8x256xf32>
    %34 = vector.extract_strided_slice %1 {offsets = [0, 3], sizes = [8, 1], strides = [1, 1]} : vector<8x9xf32> to vector<8x1xf32>
    %35 = vector.broadcast %34 : vector<8x1xf32> to vector<8x256xf32>
    %36 = arith.mulf %33, %35 : vector<8x256xf32>
    %37 = arith.addf %29, %36 : vector<8x256xf32>
    %c255_i32 = arith.constant 255 : i32
    %38 = tpu.dynamic_rotate %0 by %c255_i32 dim 1 : vector<8x256xf32>, i32 -> vector<8x256xf32>
    %39 = vector.extract_strided_slice %2 {offsets = [5, 0], sizes = [1, 256], strides = [1, 1]} : vector<9x256xf32> to vector<1x256xf32>
    %40 = vector.broadcast %39 : vector<1x256xf32> to vector<8x256xf32>
    %41 = arith.mulf %38, %40 : vector<8x256xf32>
    %42 = vector.extract_strided_slice %1 {offsets = [0, 5], sizes = [8, 1], strides = [1, 1]} : vector<8x9xf32> to vector<8x1xf32>
    %43 = vector.broadcast %42 : vector<8x1xf32> to vector<8x256xf32>
    %44 = arith.mulf %41, %43 : vector<8x256xf32>
    %45 = arith.addf %37, %44 : vector<8x256xf32>
    %c241_i32 = arith.constant 241 : i32
    %46 = tpu.dynamic_rotate %0 by %c241_i32 dim 1 : vector<8x256xf32>, i32 -> vector<8x256xf32>
    %47 = vector.extract_strided_slice %2 {offsets = [6, 0], sizes = [1, 256], strides = [1, 1]} : vector<9x256xf32> to vector<1x256xf32>
    %48 = vector.broadcast %47 : vector<1x256xf32> to vector<8x256xf32>
    %49 = arith.mulf %46, %48 : vector<8x256xf32>
    %50 = vector.extract_strided_slice %1 {offsets = [0, 6], sizes = [8, 1], strides = [1, 1]} : vector<8x9xf32> to vector<8x1xf32>
    %51 = vector.broadcast %50 : vector<8x1xf32> to vector<8x256xf32>
    %52 = arith.mulf %49, %51 : vector<8x256xf32>
    %53 = arith.addf %45, %52 : vector<8x256xf32>
    %c240_i32 = arith.constant 240 : i32
    %54 = tpu.dynamic_rotate %0 by %c240_i32 dim 1 : vector<8x256xf32>, i32 -> vector<8x256xf32>
    %55 = vector.extract_strided_slice %2 {offsets = [7, 0], sizes = [1, 256], strides = [1, 1]} : vector<9x256xf32> to vector<1x256xf32>
    %56 = vector.broadcast %55 : vector<1x256xf32> to vector<8x256xf32>
    %57 = arith.mulf %54, %56 : vector<8x256xf32>
    %58 = vector.extract_strided_slice %1 {offsets = [0, 7], sizes = [8, 1], strides = [1, 1]} : vector<8x9xf32> to vector<8x1xf32>
    %59 = vector.broadcast %58 : vector<8x1xf32> to vector<8x256xf32>
    %60 = arith.mulf %57, %59 : vector<8x256xf32>
    %61 = arith.addf %53, %60 : vector<8x256xf32>
    %c239_i32 = arith.constant 239 : i32
    %62 = tpu.dynamic_rotate %0 by %c239_i32 dim 1 : vector<8x256xf32>, i32 -> vector<8x256xf32>
    %63 = vector.extract_strided_slice %2 {offsets = [8, 0], sizes = [1, 256], strides = [1, 1]} : vector<9x256xf32> to vector<1x256xf32>
    %64 = vector.broadcast %63 : vector<1x256xf32> to vector<8x256xf32>
    %65 = arith.mulf %62, %64 : vector<8x256xf32>
    %66 = vector.extract_strided_slice %1 {offsets = [0, 8], sizes = [8, 1], strides = [1, 1]} : vector<8x9xf32> to vector<8x1xf32>
    %67 = vector.broadcast %66 : vector<8x1xf32> to vector<8x256xf32>
    %68 = arith.mulf %65, %67 : vector<8x256xf32>
    %69 = arith.addf %61, %68 : vector<8x256xf32>
    %c0_5 = arith.constant 0 : index
    %c0_6 = arith.constant 0 : index
    %70 = vector.load %arg4[%c0_5, %c0_6] : memref<16x8xbf16, #tpu.memory_space<vmem>>, vector<16x8xbf16>
    %71 = arith.truncf %69 : vector<8x256xf32> to vector<8x256xbf16>
    %cst = arith.constant dense<0.000000e+00> : vector<16x256xf32>
    %72 = tpu.matmul %70, %71, %cst {dimension_numbers = #tpu.dot_dimension_numbers<[1], [0], [0], [1], [0, 0, 1, 1], [], []>} : vector<16x8xbf16>, vector<8x256xbf16>, vector<16x256xf32> -> vector<16x256xf32>
    %c0_7 = arith.constant 0 : index
    %c0_8 = arith.constant 0 : index
    %73 = vector.load %arg5[%c0_7, %c0_8] : memref<16x1xf32, #tpu.memory_space<vmem>>, vector<16x1xf32>
    %74 = vector.broadcast %73 : vector<16x1xf32> to vector<16x256xf32>
    %75 = arith.addf %72, %74 : vector<16x256xf32>
    %c0_9 = arith.constant 0 : index
    %c0_10 = arith.constant 0 : index
    %76 = vector.load %arg6[%c0_9, %c0_10] : memref<16x256xf32, #tpu.memory_space<vmem>>, vector<16x256xf32>
    tpu.vector_store %arg6[%c0_9, %c0_10], %75 {strides = array<i32>} : memref<16x256xf32, #tpu.memory_space<vmem>>, vector<16x256xf32>,
    return
  }
  func.func @transform_0(%arg0: i32) -> (i32, i32) {
    %c0_i32 = arith.constant 0 : i32
    %c0_i32_0 = arith.constant 0 : i32
    return %arg0, %c0_i32 : i32, i32
  }
  func.func @transform_1(%arg0: i32) -> (i32, i32) {
    %c0_i32 = arith.constant 0 : i32
    %c0_i32_0 = arith.constant 0 : i32
    %c0_i32_1 = arith.constant 0 : i32
    return %c0_i32, %c0_i32_0 : i32, i32
  }
  func.func @transform_2(%arg0: i32) -> (i32, i32) {
    %c0_i32 = arith.constant 0 : i32
    %c0_i32_0 = arith.constant 0 : i32
    %c0_i32_1 = arith.constant 0 : i32
    return %c0_i32, %c0_i32_0 : i32, i32
  }
  func.func @transform_3(%arg0: i32) -> (i32, i32) {
    %c0_i32 = arith.constant 0 : i32
    %c0_i32_0 = arith.constant 0 : i32
    %c0_i32_1 = arith.constant 0 : i32
    return %c0_i32, %c0_i32_0 : i32, i32
  }
  func.func @transform_4(%arg0: i32) -> (i32, i32) {
    %c0_i32 = arith.constant 0 : i32
    %c0_i32_0 = arith.constant 0 : i32
    %c0_i32_1 = arith.constant 0 : i32
    return %c0_i32, %c0_i32_0 : i32, i32
  }
  func.func @transform_5(%arg0: i32) -> (i32, i32) {
    %c0_i32 = arith.constant 0 : i32
    %c0_i32_0 = arith.constant 0 : i32
    return %arg0, %c0_i32 : i32, i32
  }
}

module attributes {stable_mosaic.version = 11 : i64} {
  func.func @_dwsep_kernel(%arg0: i32, %arg1: memref<8x256xf32, #tpu.memory_space<vmem>>, %arg2: memref<8x9xf32, #tpu.memory_space<vmem>>, %arg3: memref<9x256xf32, #tpu.memory_space<vmem>>, %arg4: memref<16x8xbf16, #tpu.memory_space<vmem>>, %arg5: memref<16x1xf32, #tpu.memory_space<vmem>>, %arg6: memref<16x256xf32, #tpu.memory_space<vmem>>) attributes {dimension_semantics = [#tpu.dimension_semantics<parallel>], iteration_bounds = array<i64: 1>, scalar_prefetch = 0 : i64, scratch_operands = 0 : i64, tpu.core_type = #tpu.core_type<tc>, window_params = [{transform_indices = @transform_0, window_bounds = array<i64: 8, 256>}, {pipeline_mode = #tpu.pipeline_mode<synchronous>, transform_indices = @transform_1, window_bounds = array<i64: 8, 9>}, {pipeline_mode = #tpu.pipeline_mode<synchronous>, transform_indices = @transform_2, window_bounds = array<i64: 9, 256>}, {pipeline_mode = #tpu.pipeline_mode<synchronous>, transform_indices = @transform_3, window_bounds = array<i64: 16, 8>}, {pipeline_mode = #tpu.pipeline_mode<synchronous>, transform_indices = @transform_4, window_bounds = array<i64: 16, 1>}, {transform_indices = @transform_5, window_bounds = array<i64: 16, 256>}]} {
    %c0 = arith.constant 0 : index
    %c0_0 = arith.constant 0 : index
    %0 = vector.load %arg1[%c0, %c0_0] : memref<8x256xf32, #tpu.memory_space<vmem>>, vector<8x256xf32>
    %c0_1 = arith.constant 0 : index
    %c0_2 = arith.constant 0 : index
    %1 = vector.load %arg2[%c0_1, %c0_2] : memref<8x9xf32, #tpu.memory_space<vmem>>, vector<8x9xf32>
    %c0_3 = arith.constant 0 : index
    %c0_4 = arith.constant 0 : index
    %2 = vector.load %arg3[%c0_3, %c0_4] : memref<9x256xf32, #tpu.memory_space<vmem>>, vector<9x256xf32>
    %3 = vector.extract_strided_slice %1 {offsets = [0, 4], sizes = [8, 1], strides = [1, 1]} : vector<8x9xf32> to vector<8x1xf32>
    %4 = vector.broadcast %3 : vector<8x1xf32> to vector<8x256xf32>
    %5 = arith.mulf %0, %4 : vector<8x256xf32>
    %c17_i32 = arith.constant 17 : i32
    %6 = tpu.dynamic_rotate %0 by %c17_i32 dim 1 : vector<8x256xf32>, i32 -> vector<8x256xf32>
    %7 = vector.extract_strided_slice %2 {offsets = [0, 0], sizes = [1, 256], strides = [1, 1]} : vector<9x256xf32> to vector<1x256xf32>
    %8 = vector.broadcast %7 : vector<1x256xf32> to vector<8x256xf32>
    %9 = arith.mulf %6, %8 : vector<8x256xf32>
    %10 = vector.extract_strided_slice %1 {offsets = [0, 0], sizes = [8, 1], strides = [1, 1]} : vector<8x9xf32> to vector<8x1xf32>
    %11 = vector.broadcast %10 : vector<8x1xf32> to vector<8x256xf32>
    %12 = arith.mulf %9, %11 : vector<8x256xf32>
    %13 = arith.addf %5, %12 : vector<8x256xf32>
    %c16_i32 = arith.constant 16 : i32
    %14 = tpu.dynamic_rotate %0 by %c16_i32 dim 1 : vector<8x256xf32>, i32 -> vector<8x256xf32>
    %15 = vector.extract_strided_slice %2 {offsets = [1, 0], sizes = [1, 256], strides = [1, 1]} : vector<9x256xf32> to vector<1x256xf32>
    %16 = vector.broadcast %15 : vector<1x256xf32> to vector<8x256xf32>
    %17 = arith.mulf %14, %16 : vector<8x256xf32>
    %18 = vector.extract_strided_slice %1 {offsets = [0, 1], sizes = [8, 1], strides = [1, 1]} : vector<8x9xf32> to vector<8x1xf32>
    %19 = vector.broadcast %18 : vector<8x1xf32> to vector<8x256xf32>
    %20 = arith.mulf %17, %19 : vector<8x256xf32>
    %21 = arith.addf %13, %20 : vector<8x256xf32>
    %c15_i32 = arith.constant 15 : i32
    %22 = tpu.dynamic_rotate %0 by %c15_i32 dim 1 : vector<8x256xf32>, i32 -> vector<8x256xf32>
    %23 = vector.extract_strided_slice %2 {offsets = [2, 0], sizes = [1, 256], strides = [1, 1]} : vector<9x256xf32> to vector<1x256xf32>
    %24 = vector.broadcast %23 : vector<1x256xf32> to vector<8x256xf32>
    %25 = arith.mulf %22, %24 : vector<8x256xf32>
    %26 = vector.extract_strided_slice %1 {offsets = [0, 2], sizes = [8, 1], strides = [1, 1]} : vector<8x9xf32> to vector<8x1xf32>
    %27 = vector.broadcast %26 : vector<8x1xf32> to vector<8x256xf32>
    %28 = arith.mulf %25, %27 : vector<8x256xf32>
    %29 = arith.addf %21, %28 : vector<8x256xf32>
    %c1_i32 = arith.constant 1 : i32
    %30 = tpu.dynamic_rotate %0 by %c1_i32 dim 1 : vector<8x256xf32>, i32 -> vector<8x256xf32>
    %31 = vector.extract_strided_slice %2 {offsets = [3, 0], sizes = [1, 256], strides = [1, 1]} : vector<9x256xf32> to vector<1x256xf32>
    %32 = vector.broadcast %31 : vector<1x256xf32> to vector<8x256xf32>
    %33 = arith.mulf %30, %32 : vector<8x256xf32>
    %34 = vector.extract_strided_slice %1 {offsets = [0, 3], sizes = [8, 1], strides = [1, 1]} : vector<8x9xf32> to vector<8x1xf32>
    %35 = vector.broadcast %34 : vector<8x1xf32> to vector<8x256xf32>
    %36 = arith.mulf %33, %35 : vector<8x256xf32>
    %37 = arith.addf %29, %36 : vector<8x256xf32>
    %c255_i32 = arith.constant 255 : i32
    %38 = tpu.dynamic_rotate %0 by %c255_i32 dim 1 : vector<8x256xf32>, i32 -> vector<8x256xf32>
    %39 = vector.extract_strided_slice %2 {offsets = [5, 0], sizes = [1, 256], strides = [1, 1]} : vector<9x256xf32> to vector<1x256xf32>
    %40 = vector.broadcast %39 : vector<1x256xf32> to vector<8x256xf32>
    %41 = arith.mulf %38, %40 : vector<8x256xf32>
    %42 = vector.extract_strided_slice %1 {offsets = [0, 5], sizes = [8, 1], strides = [1, 1]} : vector<8x9xf32> to vector<8x1xf32>
    %43 = vector.broadcast %42 : vector<8x1xf32> to vector<8x256xf32>
    %44 = arith.mulf %41, %43 : vector<8x256xf32>
    %45 = arith.addf %37, %44 : vector<8x256xf32>
    %c241_i32 = arith.constant 241 : i32
    %46 = tpu.dynamic_rotate %0 by %c241_i32 dim 1 : vector<8x256xf32>, i32 -> vector<8x256xf32>
    %47 = vector.extract_strided_slice %2 {offsets = [6, 0], sizes = [1, 256], strides = [1, 1]} : vector<9x256xf32> to vector<1x256xf32>
    %48 = vector.broadcast %47 : vector<1x256xf32> to vector<8x256xf32>
    %49 = arith.mulf %46, %48 : vector<8x256xf32>
    %50 = vector.extract_strided_slice %1 {offsets = [0, 6], sizes = [8, 1], strides = [1, 1]} : vector<8x9xf32> to vector<8x1xf32>
    %51 = vector.broadcast %50 : vector<8x1xf32> to vector<8x256xf32>
    %52 = arith.mulf %49, %51 : vector<8x256xf32>
    %53 = arith.addf %45, %52 : vector<8x256xf32>
    %c240_i32 = arith.constant 240 : i32
    %54 = tpu.dynamic_rotate %0 by %c240_i32 dim 1 : vector<8x256xf32>, i32 -> vector<8x256xf32>
    %55 = vector.extract_strided_slice %2 {offsets = [7, 0], sizes = [1, 256], strides = [1, 1]} : vector<9x256xf32> to vector<1x256xf32>
    %56 = vector.broadcast %55 : vector<1x256xf32> to vector<8x256xf32>
    %57 = arith.mulf %54, %56 : vector<8x256xf32>
    %58 = vector.extract_strided_slice %1 {offsets = [0, 7], sizes = [8, 1], strides = [1, 1]} : vector<8x9xf32> to vector<8x1xf32>
    %59 = vector.broadcast %58 : vector<8x1xf32> to vector<8x256xf32>
    %60 = arith.mulf %57, %59 : vector<8x256xf32>
    %61 = arith.addf %53, %60 : vector<8x256xf32>
    %c239_i32 = arith.constant 239 : i32
    %62 = tpu.dynamic_rotate %0 by %c239_i32 dim 1 : vector<8x256xf32>, i32 -> vector<8x256xf32>
    %63 = vector.extract_strided_slice %2 {offsets = [8, 0], sizes = [1, 256], strides = [1, 1]} : vector<9x256xf32> to vector<1x256xf32>
    %64 = vector.broadcast %63 : vector<1x256xf32> to vector<8x256xf32>
    %65 = arith.mulf %62, %64 : vector<8x256xf32>
    %66 = vector.extract_strided_slice %1 {offsets = [0, 8], sizes = [8, 1], strides = [1, 1]} : vector<8x9xf32> to vector<8x1xf32>
    %67 = vector.broadcast %66 : vector<8x1xf32> to vector<8x256xf32>
    %68 = arith.mulf %65, %67 : vector<8x256xf32>
    %69 = arith.addf %61, %68 : vector<8x256xf32>
    %c0_5 = arith.constant 0 : index
    %c0_6 = arith.constant 0 : index
    %70 = vector.load %arg4[%c0_5, %c0_6] : memref<16x8xbf16, #tpu.memory_space<vmem>>, vector<16x8xbf16>
    %71 = arith.truncf %69 : vector<8x256xf32> to vector<8x256xbf16>
    %cst = arith.constant dense<0.000000e+00> : vector<16x256xf32>
    %72 = tpu.matmul %70, %71, %cst {dimension_numbers = #tpu.dot_dimension_numbers<[1], [0], [0], [1], [0, 0, 1, 1], [], []>} : vector<16x8xbf16>, vector<8x256xbf16>, vector<16x256xf32> -> vector<16x256xf32>
    %c0_7 = arith.constant 0 : index
    %c0_8 = arith.constant 0 : index
    %73 = vector.load %arg5[%c0_7, %c0_8] : memref<16x1xf32, #tpu.memory_space<vmem>>, vector<16x1xf32>
    %74 = vector.broadcast %73 : vector<16x1xf32> to vector<16x256xf32>
    %75 = arith.addf %72, %74 : vector<16x256xf32>
    %c0_9 = arith.constant 0 : index
    %c0_10 = arith.constant 0 : index
    %76 = vector.load %arg6[%c0_9, %c0_10] : memref<16x256xf32, #tpu.memory_space<vmem>>, vector<16x256xf32>
    tpu.vector_store %arg6[%c0_9, %c0_10], %75 {strides = array<i32>} : memref<16x256xf32, #tpu.memory_space<vmem>>, vector<16x256xf32>,
    return
  }
  func.func @transform_0(%arg0: i32) -> (i32, i32) {
    %c0_i32 = arith.constant 0 : i32
    %c0_i32_0 = arith.constant 0 : i32
    return %arg0, %c0_i32 : i32, i32
  }
  func.func @transform_1(%arg0: i32) -> (i32, i32) {
    %c0_i32 = arith.constant 0 : i32
    %c0_i32_0 = arith.constant 0 : i32
    %c0_i32_1 = arith.constant 0 : i32
    return %c0_i32, %c0_i32_0 : i32, i32
  }
  func.func @transform_2(%arg0: i32) -> (i32, i32) {
    %c0_i32 = arith.constant 0 : i32
    %c0_i32_0 = arith.constant 0 : i32
    %c0_i32_1 = arith.constant 0 : i32
    return %c0_i32, %c0_i32_0 : i32, i32
  }
  func.func @transform_3(%arg0: i32) -> (i32, i32) {
    %c0_i32 = arith.constant 0 : i32
    %c0_i32_0 = arith.constant 0 : i32
    %c0_i32_1 = arith.constant 0 : i32
    return %c0_i32, %c0_i32_0 : i32, i32
  }
  func.func @transform_4(%arg0: i32) -> (i32, i32) {
    %c0_i32 = arith.constant 0 : i32
    %c0_i32_0 = arith.constant 0 : i32
    %c0_i32_1 = arith.constant 0 : i32
    return %c0_i32, %c0_i32_0 : i32, i32
  }
  func.func @transform_5(%arg0: i32) -> (i32, i32) {
    %c0_i32 = arith.constant 0 : i32
    %c0_i32_0 = arith.constant 0 : i32
    return %arg0, %c0_i32 : i32, i32
  }
}

</mosaic_0001>

<llo_original>
// kernel: tpu_custom_call.1
$region0: #{tpu_custom_call.1}
  #allocation0 [shape = 'u32[]', space=smem, size = 0x4, offset = 0x4, fixed_abs, tag = 'smem constant byte address 0x4 - core index']
  #allocation1 [shape = 'u32[144,128]{1,0:T(1,128)}', space=vmem, size = 0x12000, scoped, tag = 'internal scratch']
  %s0 = inlined_call_operand.hbm [shape: f32[8,256], index: 0, kind: input, shape index: {}]
  %s1 = inlined_call_operand.hbm [shape: f32[8,9], index: 1, kind: input, shape index: {}]
  %s2 = inlined_call_operand.vmem [shape: f32[9,256], index: 2, kind: input, shape index: {}]
  %s3 = inlined_call_operand.vmem [shape: bf16[16,8], index: 3, kind: input, shape index: {}]
  %s4 = inlined_call_operand.vmem [shape: f32[16,1], index: 4, kind: input, shape index: {}]
  %s5 = inlined_call_operand.hbm [shape: f32[16,256], index: 5, kind: output, shape index: {}]
  %s6 = sld [smem:[#allocation0]]
  $region38: #{tpu_custom_call.1} parent=0
    _
  %s8 = ssub.s32 1, %s6
  %s9 = scalar_select 0, %s8, %s6
  $region1: #{tpu_custom_call.1} parent=0
    #allocation2 [shape = 'u8[8192]{0}', space=vmem, size = 0x2000, scoped, tag = 'input window, operand 0, single buffered']
    #allocation3 [shape = 's32[1]{0}', space=sflag, size = 0x4, scoped, tag = 'scoped memory for tpu_custom_call.1']
    #allocation4 [shape = 's32[1]{0}', space=sflag, size = 0x4, scoped, tag = 'scoped memory for tpu_custom_call.1']
    #allocation5 [shape = 'u8[4096]{0}', space=vmem, size = 0x1000, scoped, tag = 'input window, operand 1, single buffered']
    #allocation6 [shape = 's32[1]{0}', space=sflag, size = 0x4, scoped, tag = 'scoped memory for tpu_custom_call.1']
    #allocation7 [shape = 'u8[16384]{0}', space=vmem, size = 0x4000, scoped, tag = 'output window, operand 0, single buffered']
    %10 = vsyncpa [#allocation3], 0
    %11 = vsyncpa [#allocation6], 0
    %12 = vsyncpa [#allocation4], 0
    // Predicated region
    $region2: #{tpu_custom_call.1} parent=1 // pred_check
      _
    $region3: #{tpu_custom_call.1} parent=1 // pred_check_branch
      %14 = sbr.rel (0) target = $region5
    $region4: #{tpu_custom_call.1} parent=1 // pred_region
      %s16 = ssub.s32 256, 256
      %17 = vsyncadd [#allocation3], %s16
      %s19 = sshll.u32 [#allocation2], 4
      %s20 = int_to_ptr.vmem [resolvable:$true] %s19
      %22 = dma.hbm_to_vmem [thread:$0]  %s0, 256, %s20, [#allocation3]
    $region5: #{tpu_custom_call.1} parent=1 // pred_fallthru
      _
    // Predicated region
    $region6: #{tpu_custom_call.1} parent=1 // pred_check
      _
    $region7: #{tpu_custom_call.1} parent=1 // pred_check_branch
      %24 = sbr.rel (0) target = $region9
    $region8: #{tpu_custom_call.1} parent=1 // pred_region
      %s26 = ssub.s32 128, 128
      %27 = vsyncadd [#allocation6], %s26
      %s29 = sshll.u32 [#allocation5], 4
      %s30 = int_to_ptr.vmem [resolvable:$true] %s29
      %32 = dma.hbm_to_vmem [thread:$0]  %s1, 128, %s30, [#allocation6]
    $region9: #{tpu_custom_call.1} parent=1 // pred_fallthru
      _
    // Predicated region
    $region10: #{tpu_custom_call.1} parent=1 // pred_check
      _
    $region11: #{tpu_custom_call.1} parent=1 // pred_check_branch
      %34 = sbr.rel (0) target = $region13
    $region12: #{tpu_custom_call.1} parent=1 // pred_region
      _
    $region13: #{tpu_custom_call.1} parent=1 // pred_fallthru
      _
    // Predicated region
    $region14: #{tpu_custom_call.1} parent=1 // pred_check
      _
    $region15: #{tpu_custom_call.1} parent=1 // pred_check_branch
      %36 = sbr.rel (0) target = $region17
    $region16: #{tpu_custom_call.1} parent=1 // pred_region
      _
    $region17: #{tpu_custom_call.1} parent=1 // pred_fallthru
      _
    // Predicated region
    $region18: #{tpu_custom_call.1} parent=1 // pred_check
      _
    $region19: #{tpu_custom_call.1} parent=1 // pred_check_branch
      %38 = sbr.rel (0) target = $region21
    $region20: #{tpu_custom_call.1} parent=1 // pred_region
      _
    $region21: #{tpu_custom_call.1} parent=1 // pred_fallthru
      _
    // Predicated region
    $region22: #{tpu_custom_call.1} parent=1 // pred_check
      _
    $region23: #{tpu_custom_call.1} parent=1 // pred_check_branch
      %40 = sbr.rel (0) target = $region25
    $region24: #{tpu_custom_call.1} parent=1 // pred_region
      %41 = dma.done [#allocation3], 256
    $region25: #{tpu_custom_call.1} parent=1 // pred_fallthru
      _
    // Predicated region
    $region26: #{tpu_custom_call.1} parent=1 // pred_check
      _
    $region27: #{tpu_custom_call.1} parent=1 // pred_check_branch
      %43 = sbr.rel (0) target = $region29
    $region28: #{tpu_custom_call.1} parent=1 // pred_region
      %44 = dma.done [#allocation6], 128
    $region29: #{tpu_custom_call.1} parent=1 // pred_fallthru
      _
    %v46 = vld [vmem:[#allocation2] sm:$0xff]
    %v47 = vld [vmem:[#allocation2 + $0x8] sm:$0xff]
    %v48 = vld [vmem:[#allocation5] sm:$0xff]
    %v49 = vld [vmem:[%s2] sm:$0xff]
    %v50 = vld [vmem:[%s2 + $0x8] sm:$0xff]
    %v51 = vld [vmem:[%s2 + $0x10] sm:$0x1]
    %v52 = vld [vmem:[%s2 + $0x18] sm:$0x1]
    %54 = vset.pattern.permute.xlu0 4
    %55 = vperm.xlu0 %54, %v48
    %v56 = vpop.permute.xlu0 %55
    %v58 = vmul.f32 %v46, %v56
    %v59 = vmul.f32 %v47, %v56
    %60 = vrot.lane.b32.xlu0 %v46, 17
    %v61 = vpop.permute.xlu0 %60
    %62 = vrot.lane.b32.xlu0 %v47, 17
    %v63 = vpop.permute.xlu0 %62
    %v64 = vlaneseq
    %v65 = vand.u32 %v64, 127
    %vm66 = vcmp.lt.s32.totalorder %v65, 17
    %v67 = vsel %vm66, %v61, %v63
    %v68 = vsel %vm66, %v63, %v61
    %v69 = vlaneseq
    %v70 = vshrl.u32 %v69, 7
    %v71 = vsub.s32 0, %v70
    %v72 = vrot.slane %v49, %v71
    %v73 = vlaneseq
    %v74 = vshrl.u32 %v73, 7
    %v75 = vsub.s32 0, %v74
    %v76 = vrot.slane %v50, %v75
    %v77 = vmul.f32 %v68, %v72
    %v78 = vmul.f32 %v67, %v76
    %79 = vset.pattern.permute.xlu0 0
    %80 = vperm.xlu0 %79, %v48
    %v81 = vpop.permute.xlu0 %80
    %v83 = vmul.f32 %v77, %v81
    %v84 = vmul.f32 %v78, %v81
    %v85 = vadd.f32 %v58, %v83
    %v86 = vadd.f32 %v59, %v84
    %87 = vrot.lane.b32.xlu0 %v46, 16
    %v88 = vpop.permute.xlu0 %87
    %89 = vrot.lane.b32.xlu0 %v47, 16
    %v90 = vpop.permute.xlu0 %89
    %vm91 = vcmp.lt.s32.totalorder %v65, 16
    %v92 = vsel %vm91, %v88, %v90
    %v93 = vsel %vm91, %v90, %v88
    %v94 = vlaneseq
    %v95 = vshrl.u32 %v94, 7
    %v96 = vsub.s32 1, %v95
    %v97 = vrot.slane %v49, %v96
    %v98 = vlaneseq
    %v99 = vshrl.u32 %v98, 7
    %v100 = vsub.s32 1, %v99
    %v101 = vrot.slane %v50, %v100
    %v102 = vmul.f32 %v93, %v97
    %v103 = vmul.f32 %v92, %v101
    %104 = vset.pattern.permute.xlu0 1
    %105 = vperm.xlu0 %104, %v48
    %v106 = vpop.permute.xlu0 %105
    %v108 = vmul.f32 %v102, %v106
    %v109 = vmul.f32 %v103, %v106
    %v110 = vadd.f32 %v85, %v108
    %v111 = vadd.f32 %v86, %v109
    %112 = vrot.lane.b32.xlu0 %v46, 15
    %v113 = vpop.permute.xlu0 %112
    %114 = vrot.lane.b32.xlu0 %v47, 15
    %v115 = vpop.permute.xlu0 %114
    %vm116 = vcmp.lt.s32.totalorder %v65, 15
    %v117 = vsel %vm116, %v113, %v115
    %v118 = vsel %vm116, %v115, %v113
    %v119 = vlaneseq
    %v120 = vshrl.u32 %v119, 7
    %v121 = vsub.s32 2, %v120
    %v122 = vrot.slane %v49, %v121
    %v123 = vlaneseq
    %v124 = vshrl.u32 %v123, 7
    %v125 = vsub.s32 2, %v124
    %v126 = vrot.slane %v50, %v125
    %v127 = vmul.f32 %v118, %v122
    %v128 = vmul.f32 %v117, %v126
    %129 = vset.pattern.permute.xlu0 2
    %130 = vperm.xlu0 %129, %v48
    %v131 = vpop.permute.xlu0 %130
    %v133 = vmul.f32 %v127, %v131
    %v134 = vmul.f32 %v128, %v131
    %v135 = vadd.f32 %v110, %v133
    %v136 = vadd.f32 %v111, %v134
    %137 = vrot.lane.b32.xlu0 %v46, 1
    %v138 = vpop.permute.xlu0 %137
    %139 = vrot.lane.b32.xlu0 %v47, 1
    %v140 = vpop.permute.xlu0 %139
    %vm141 = vcmp.lt.s32.totalorder %v65, 1
    %v142 = vsel %vm141, %v138, %v140
    %v143 = vsel %vm141, %v140, %v138
    %v144 = vlaneseq
    %v145 = vshrl.u32 %v144, 7
    %v146 = vsub.s32 3, %v145
    %v147 = vrot.slane %v49, %v146
    %v148 = vlaneseq
    %v149 = vshrl.u32 %v148, 7
    %v150 = vsub.s32 3, %v149
    %v151 = vrot.slane %v50, %v150
    %v152 = vmul.f32 %v143, %v147
    %v153 = vmul.f32 %v142, %v151
    %154 = vset.pattern.permute.xlu0 3
    %155 = vperm.xlu0 %154, %v48
    %v156 = vpop.permute.xlu0 %155
    %v158 = vmul.f32 %v152, %v156
    %v159 = vmul.f32 %v153, %v156
    %v160 = vadd.f32 %v135, %v158
    %v161 = vadd.f32 %v136, %v159
    %162 = vrot.lane.b32.xlu0 %v46, 127
    %v163 = vpop.permute.xlu0 %162
    %164 = vrot.lane.b32.xlu0 %v47, 127
    %v165 = vpop.permute.xlu0 %164
    %vm166 = vcmp.lt.s32.totalorder %v65, 127
    %v167 = vsel %vm166, %v163, %v165
    %v168 = vsel %vm166, %v165, %v163
    %v169 = vlaneseq
    %v170 = vshrl.u32 %v169, 7
    %v171 = vsub.s32 5, %v170
    %v172 = vrot.slane %v49, %v171
    %v173 = vlaneseq
    %v174 = vshrl.u32 %v173, 7
    %v175 = vsub.s32 5, %v174
    %v176 = vrot.slane %v50, %v175
    %v177 = vmul.f32 %v167, %v172
    %v178 = vmul.f32 %v168, %v176
    %179 = vset.pattern.permute.xlu0 5
    %180 = vperm.xlu0 %179, %v48
    %v181 = vpop.permute.xlu0 %180
    %v183 = vmul.f32 %v177, %v181
    %v184 = vmul.f32 %v178, %v181
    %v185 = vadd.f32 %v160, %v183
    %v186 = vadd.f32 %v161, %v184
    %187 = vrot.lane.b32.xlu0 %v46, 113
    %v188 = vpop.permute.xlu0 %187
    %189 = vrot.lane.b32.xlu0 %v47, 113
    %v190 = vpop.permute.xlu0 %189
    %vm191 = vcmp.lt.s32.totalorder %v65, 113
    %v192 = vsel %vm191, %v188, %v190
    %v193 = vsel %vm191, %v190, %v188
    %v194 = vlaneseq
    %v195 = vshrl.u32 %v194, 7
    %v196 = vsub.s32 6, %v195
    %v197 = vrot.slane %v49, %v196
    %v198 = vlaneseq
    %v199 = vshrl.u32 %v198, 7
    %v200 = vsub.s32 6, %v199
    %v201 = vrot.slane %v50, %v200
    %v202 = vmul.f32 %v192, %v197
    %v203 = vmul.f32 %v193, %v201
    %204 = vset.pattern.permute.xlu0 6
    %205 = vperm.xlu0 %204, %v48
    %v206 = vpop.permute.xlu0 %205
    %v208 = vmul.f32 %v202, %v206
    %v209 = vmul.f32 %v203, %v206
    %v210 = vadd.f32 %v185, %v208
    %v211 = vadd.f32 %v186, %v209
    %212 = vrot.lane.b32.xlu0 %v46, 112
    %v213 = vpop.permute.xlu0 %212
    %214 = vrot.lane.b32.xlu0 %v47, 112
    %v215 = vpop.permute.xlu0 %214
    %vm216 = vcmp.lt.s32.totalorder %v65, 112
    %v217 = vsel %vm216, %v213, %v215
    %v218 = vsel %vm216, %v215, %v213
    %v219 = vlaneseq
    %v220 = vshrl.u32 %v219, 7
    %v221 = vsub.s32 7, %v220
    %v222 = vrot.slane %v49, %v221
    %v223 = vlaneseq
    %v224 = vshrl.u32 %v223, 7
    %v225 = vsub.s32 7, %v224
    %v226 = vrot.slane %v50, %v225
    %v227 = vmul.f32 %v217, %v222
    %v228 = vmul.f32 %v218, %v226
    %229 = vset.pattern.permute.xlu0 7
    %230 = vperm.xlu0 %229, %v48
    %v231 = vpop.permute.xlu0 %230
    %v233 = vmul.f32 %v227, %v231
    %v234 = vmul.f32 %v228, %v231
    %v235 = vadd.f32 %v210, %v233
    %v236 = vadd.f32 %v211, %v234
    %237 = vrot.lane.b32.xlu0 %v46, 111
    %v238 = vpop.permute.xlu0 %237
    %239 = vrot.lane.b32.xlu0 %v47, 111
    %v240 = vpop.permute.xlu0 %239
    %vm241 = vcmp.lt.s32.totalorder %v65, 111
    %v242 = vsel %vm241, %v238, %v240
    %v243 = vsel %vm241, %v240, %v238
    %v244 = vlaneseq
    %v245 = vshrl.u32 %v244, 7
    %v246 = vsub.s32 0, %v245
    %v247 = vrot.slane %v51, %v246
    %v248 = vlaneseq
    %v249 = vshrl.u32 %v248, 7
    %v250 = vsub.s32 0, %v249
    %v251 = vrot.slane %v52, %v250
    %v252 = vmul.f32 %v242, %v247
    %v253 = vmul.f32 %v243, %v251
    %254 = vset.pattern.permute.xlu0 8
    %255 = vperm.xlu0 %254, %v48
    %v256 = vpop.permute.xlu0 %255
    %v258 = vmul.f32 %v252, %v256
    %v259 = vmul.f32 %v253, %v256
    %v260 = vadd.f32 %v235, %v258
    %v261 = vadd.f32 %v236, %v259
    %v262 = vld [vmem:[%s3] sm:$0xf]
    %v263 = vld [vmem:[%s3 + $0x4] sm:$0xf]
    %v264 = vpack.c.bf16 %v260, %v260
    %v265 = vpack.c.bf16 %v261, %v261
    %v266 = vld [vmem:[%s4] sm:$0xff]
    %v267 = vld [vmem:[%s4 + $0x8] sm:$0xff]
    %269 = vset.pattern.permute.xlu0 0
    %270 = vperm.xlu0 %269, %v266
    %v271 = vpop.permute.xlu0 %270
    %274 = vset.pattern.permute.xlu0 0
    %275 = vperm.xlu0 %274, %v267
    %v276 = vpop.permute.xlu0 %275
    %v280 = vunpack.c.l.b16 %v262
    %v281 = vunpack.c.l.b16 %v263
    %v282 = vpack.c.b16 %v281, %v280
    %vm283 = vcmask 64512
    %v285 = vsel %vm283, %v282, 0
    %vm287 = vcmask 1043456
    %v289 = vsel %vm287, %v264, 0
    %v292 = vsel %vm287, %v265, 0
    %294 = vmatprep.subr.bf16.mxu0 %v292
    %295 = vmatpush1.bf16.msra.mxu0 %v289
    %296 = vmatprep.subr.bf16.mxu0 0
    %297 = vmatpush1.bf16.msra.mxu0 0
    %298 = vmatprep.subr.bf16.mxu0 0
    %299 = vmatpush1.bf16.msra.mxu0 0
    %300 = vmatprep.subr.bf16.mxu0 0
    %301 = vmatpush1.bf16.msra.mxu0 0
    %302 = vmatprep.subr.bf16.mxu0 0
    %303 = vmatpush1.bf16.msra.mxu0 0
    %304 = vmatprep.subr.bf16.mxu0 0
    %305 = vmatpush1.bf16.msra.mxu0 0
    %306 = vmatprep.subr.bf16.mxu0 0
    %307 = vmatpush1.bf16.msra.mxu0 0
    %308 = vmatprep.subr.bf16.mxu0 0
    %309 = vmatpush1.bf16.msra.mxu0 0
    %310 = vmatprep.subr.bf16.mxu0 0
    %311 = vmatpush1.bf16.msra.mxu0 0
    %312 = vmatprep.subr.bf16.mxu0 0
    %313 = vmatpush1.bf16.msra.mxu0 0
    %314 = vmatprep.subr.bf16.mxu0 0
    %315 = vmatpush1.bf16.msra.mxu0 0
    %316 = vmatprep.subr.bf16.mxu0 0
    %317 = vmatpush1.bf16.msra.mxu0 0
    %318 = vmatprep.subr.bf16.mxu0 0
    %319 = vmatpush1.bf16.msra.mxu0 0
    %320 = vmatprep.subr.bf16.mxu0 0
    %321 = vmatpush1.bf16.msra.mxu0 0
    %322 = vmatprep.subr.bf16.mxu0 0
    %323 = vmatpush1.bf16.msra.mxu0 0
    %324 = vmatprep.subr.bf16.mxu0 0
    %325 = vmatpush1.bf16.msra.mxu0 0
    %326 = vmatprep.mubr.bf16.mxu0 0
    %327 = vmatmul.mubr.bf16.gmra.mrb[0].mxu0 %v285
    %v328 = vpop.f32.mrb[0].mxu0
    %v329 = vadd.f32 %v271, %v328
    %v330 = vpop.f32.mrb[0].mxu0
    %v331 = vadd.f32 %v271, %v330
    %v332 = vpop.f32.mrb[0].mxu0
    %v333 = vadd.f32 %v276, %v332
    %v334 = vpop.f32.mrb[0].mxu0
    %v335 = vadd.f32 %v276, %v334
    %336 = vdwg.mxu0
    %337 = vst [vmem:[#allocation7] sm:$0xff] %v329
    %338 = vst [vmem:[#allocation7 + $0x8] sm:$0xff] %v331
    %339 = vst [vmem:[#allocation7 + $0x10] sm:$0xff] %v333
    %340 = vst [vmem:[#allocation7 + $0x18] sm:$0xff] %v335
    // Predicated region
    $region30: #{tpu_custom_call.1} parent=1 // pred_check
      _
    $region31: #{tpu_custom_call.1} parent=1 // pred_check_branch
      %342 = sbr.rel (0) target = $region33
    $region32: #{tpu_custom_call.1} parent=1 // pred_region
      %s344 = ssub.s32 512, 512
      %345 = vsyncadd [#allocation4], %s344
      %s346 = sshll.u32 [#allocation7], 4
      %s347 = int_to_ptr.vmem [resolvable:$true] %s346
      %352 = dma.vmem_to_hbm [thread:$0]  %s347, 512, %s5, [#allocation4], 256, 256, 16
    $region33: #{tpu_custom_call.1} parent=1 // pred_fallthru
      _
    // Predicated region
    $region34: #{tpu_custom_call.1} parent=1 // pred_check
      _
    $region35: #{tpu_custom_call.1} parent=1 // pred_check_branch
      %354 = sbr.rel (0) target = $region37
    $region36: #{tpu_custom_call.1} parent=1 // pred_region
      %355 = dma.done [#allocation4], 512
    $region37: #{tpu_custom_call.1} parent=1 // pred_fallthru
      _
    %356 = vsyncpa [#allocation3], 1
    %357 = vsyncpa [#allocation6], 1
    %358 = vsyncpa [#allocation4], 1

// kernel: tpu_custom_call.1
$region0: #{tpu_custom_call.1}
  #allocation0 [shape = 'u32[]', space=smem, size = 0x4, offset = 0x4, fixed_abs, tag = 'smem constant byte address 0x4 - core index']
  #allocation1 [shape = 'u32[144,128]{1,0:T(1,128)}', space=vmem, size = 0x12000, scoped, tag = 'internal scratch']
  %s0 = inlined_call_operand.hbm [shape: f32[8,256], index: 0, kind: input, shape index: {}]
  %s1 = inlined_call_operand.hbm [shape: f32[8,9], index: 1, kind: input, shape index: {}]
  %s2 = inlined_call_operand.vmem [shape: f32[9,256], index: 2, kind: input, shape index: {}]
  %s3 = inlined_call_operand.vmem [shape: bf16[16,8], index: 3, kind: input, shape index: {}]
  %s4 = inlined_call_operand.vmem [shape: f32[16,1], index: 4, kind: input, shape index: {}]
  %s5 = inlined_call_operand.hbm [shape: f32[16,256], index: 5, kind: output, shape index: {}]
  %s6 = sld [smem:[#allocation0]]
  $region38: #{tpu_custom_call.1} parent=0
    _
  %s8 = ssub.s32 1, %s6
  %s9 = scalar_select 0, %s8, %s6
  $region1: #{tpu_custom_call.1} parent=0
    #allocation2 [shape = 'u8[8192]{0}', space=vmem, size = 0x2000, scoped, tag = 'input window, operand 0, single buffered']
    #allocation3 [shape = 's32[1]{0}', space=sflag, size = 0x4, scoped, tag = 'scoped memory for tpu_custom_call.1']
    #allocation4 [shape = 's32[1]{0}', space=sflag, size = 0x4, scoped, tag = 'scoped memory for tpu_custom_call.1']
    #allocation5 [shape = 'u8[4096]{0}', space=vmem, size = 0x1000, scoped, tag = 'input window, operand 1, single buffered']
    #allocation6 [shape = 's32[1]{0}', space=sflag, size = 0x4, scoped, tag = 'scoped memory for tpu_custom_call.1']
    #allocation7 [shape = 'u8[16384]{0}', space=vmem, size = 0x4000, scoped, tag = 'output window, operand 0, single buffered']
    %10 = vsyncpa [#allocation3], 0
    %11 = vsyncpa [#allocation6], 0
    %12 = vsyncpa [#allocation4], 0
    // Predicated region
    $region2: #{tpu_custom_call.1} parent=1 // pred_check
      _
    $region3: #{tpu_custom_call.1} parent=1 // pred_check_branch
      %14 = sbr.rel (0) target = $region5
    $region4: #{tpu_custom_call.1} parent=1 // pred_region
      %s16 = ssub.s32 256, 256
      %17 = vsyncadd [#allocation3], %s16
      %s19 = sshll.u32 [#allocation2], 4
      %s20 = int_to_ptr.vmem [resolvable:$true] %s19
      %22 = dma.hbm_to_vmem [thread:$0]  %s0, 256, %s20, [#allocation3]
    $region5: #{tpu_custom_call.1} parent=1 // pred_fallthru
      _
    // Predicated region
    $region6: #{tpu_custom_call.1} parent=1 // pred_check
      _
    $region7: #{tpu_custom_call.1} parent=1 // pred_check_branch
      %24 = sbr.rel (0) target = $region9
    $region8: #{tpu_custom_call.1} parent=1 // pred_region
      %s26 = ssub.s32 128, 128
      %27 = vsyncadd [#allocation6], %s26
      %s29 = sshll.u32 [#allocation5], 4
      %s30 = int_to_ptr.vmem [resolvable:$true] %s29
      %32 = dma.hbm_to_vmem [thread:$0]  %s1, 128, %s30, [#allocation6]
    $region9: #{tpu_custom_call.1} parent=1 // pred_fallthru
      _
    // Predicated region
    $region10: #{tpu_custom_call.1} parent=1 // pred_check
      _
    $region11: #{tpu_custom_call.1} parent=1 // pred_check_branch
      %34 = sbr.rel (0) target = $region13
    $region12: #{tpu_custom_call.1} parent=1 // pred_region
      _
    $region13: #{tpu_custom_call.1} parent=1 // pred_fallthru
      _
    // Predicated region
    $region14: #{tpu_custom_call.1} parent=1 // pred_check
      _
    $region15: #{tpu_custom_call.1} parent=1 // pred_check_branch
      %36 = sbr.rel (0) target = $region17
    $region16: #{tpu_custom_call.1} parent=1 // pred_region
      _
    $region17: #{tpu_custom_call.1} parent=1 // pred_fallthru
      _
    // Predicated region
    $region18: #{tpu_custom_call.1} parent=1 // pred_check
      _
    $region19: #{tpu_custom_call.1} parent=1 // pred_check_branch
      %38 = sbr.rel (0) target = $region21
    $region20: #{tpu_custom_call.1} parent=1 // pred_region
      _
    $region21: #{tpu_custom_call.1} parent=1 // pred_fallthru
      _
    // Predicated region
    $region22: #{tpu_custom_call.1} parent=1 // pred_check
      _
    $region23: #{tpu_custom_call.1} parent=1 // pred_check_branch
      %40 = sbr.rel (0) target = $region25
    $region24: #{tpu_custom_call.1} parent=1 // pred_region
      %41 = dma.done [#allocation3], 256
    $region25: #{tpu_custom_call.1} parent=1 // pred_fallthru
      _
    // Predicated region
    $region26: #{tpu_custom_call.1} parent=1 // pred_check
      _
    $region27: #{tpu_custom_call.1} parent=1 // pred_check_branch
      %43 = sbr.rel (0) target = $region29
    $region28: #{tpu_custom_call.1} parent=1 // pred_region
      %44 = dma.done [#allocation6], 128
    $region29: #{tpu_custom_call.1} parent=1 // pred_fallthru
      _
    %v46 = vld [vmem:[#allocation2] sm:$0xff]
    %v47 = vld [vmem:[#allocation2 + $0x8] sm:$0xff]
    %v48 = vld [vmem:[#allocation5] sm:$0xff]
    %v49 = vld [vmem:[%s2] sm:$0xff]
    %v50 = vld [vmem:[%s2 + $0x8] sm:$0xff]
    %v51 = vld [vmem:[%s2 + $0x10] sm:$0x1]
    %v52 = vld [vmem:[%s2 + $0x18] sm:$0x1]
    %54 = vset.pattern.permute.xlu0 4
    %55 = vperm.xlu0 %54, %v48
    %v56 = vpop.permute.xlu0 %55
    %v58 = vmul.f32 %v46, %v56
    %v59 = vmul.f32 %v47, %v56
    %60 = vrot.lane.b32.xlu0 %v46, 17
    %v61 = vpop.permute.xlu0 %60
    %62 = vrot.lane.b32.xlu0 %v47, 17
    %v63 = vpop.permute.xlu0 %62
    %v64 = vlaneseq
    %v65 = vand.u32 %v64, 127
    %vm66 = vcmp.lt.s32.totalorder %v65, 17
    %v67 = vsel %vm66, %v61, %v63
    %v68 = vsel %vm66, %v63, %v61
    %v69 = vlaneseq
    %v70 = vshrl.u32 %v69, 7
    %v71 = vsub.s32 0, %v70
    %v72 = vrot.slane %v49, %v71
    %v73 = vlaneseq
    %v74 = vshrl.u32 %v73, 7
    %v75 = vsub.s32 0, %v74
    %v76 = vrot.slane %v50, %v75
    %v77 = vmul.f32 %v68, %v72
    %v78 = vmul.f32 %v67, %v76
    %79 = vset.pattern.permute.xlu0 0
    %80 = vperm.xlu0 %79, %v48
    %v81 = vpop.permute.xlu0 %80
    %v83 = vmul.f32 %v77, %v81
    %v84 = vmul.f32 %v78, %v81
    %v85 = vadd.f32 %v58, %v83
    %v86 = vadd.f32 %v59, %v84
    %87 = vrot.lane.b32.xlu0 %v46, 16
    %v88 = vpop.permute.xlu0 %87
    %89 = vrot.lane.b32.xlu0 %v47, 16
    %v90 = vpop.permute.xlu0 %89
    %vm91 = vcmp.lt.s32.totalorder %v65, 16
    %v92 = vsel %vm91, %v88, %v90
    %v93 = vsel %vm91, %v90, %v88
    %v94 = vlaneseq
    %v95 = vshrl.u32 %v94, 7
    %v96 = vsub.s32 1, %v95
    %v97 = vrot.slane %v49, %v96
    %v98 = vlaneseq
    %v99 = vshrl.u32 %v98, 7
    %v100 = vsub.s32 1, %v99
    %v101 = vrot.slane %v50, %v100
    %v102 = vmul.f32 %v93, %v97
    %v103 = vmul.f32 %v92, %v101
    %104 = vset.pattern.permute.xlu0 1
    %105 = vperm.xlu0 %104, %v48
    %v106 = vpop.permute.xlu0 %105
    %v108 = vmul.f32 %v102, %v106
    %v109 = vmul.f32 %v103, %v106
    %v110 = vadd.f32 %v85, %v108
    %v111 = vadd.f32 %v86, %v109
    %112 = vrot.lane.b32.xlu0 %v46, 15
    %v113 = vpop.permute.xlu0 %112
    %114 = vrot.lane.b32.xlu0 %v47, 15
    %v115 = vpop.permute.xlu0 %114
    %vm116 = vcmp.lt.s32.totalorder %v65, 15
    %v117 = vsel %vm116, %v113, %v115
    %v118 = vsel %vm116, %v115, %v113
    %v119 = vlaneseq
    %v120 = vshrl.u32 %v119, 7
    %v121 = vsub.s32 2, %v120
    %v122 = vrot.slane %v49, %v121
    %v123 = vlaneseq
    %v124 = vshrl.u32 %v123, 7
    %v125 = vsub.s32 2, %v124
    %v126 = vrot.slane %v50, %v125
    %v127 = vmul.f32 %v118, %v122
    %v128 = vmul.f32 %v117, %v126
    %129 = vset.pattern.permute.xlu0 2
    %130 = vperm.xlu0 %129, %v48
    %v131 = vpop.permute.xlu0 %130
    %v133 = vmul.f32 %v127, %v131
    %v134 = vmul.f32 %v128, %v131
    %v135 = vadd.f32 %v110, %v133
    %v136 = vadd.f32 %v111, %v134
    %137 = vrot.lane.b32.xlu0 %v46, 1
    %v138 = vpop.permute.xlu0 %137
    %139 = vrot.lane.b32.xlu0 %v47, 1
    %v140 = vpop.permute.xlu0 %139
    %vm141 = vcmp.lt.s32.totalorder %v65, 1
    %v142 = vsel %vm141, %v138, %v140
    %v143 = vsel %vm141, %v140, %v138
    %v144 = vlaneseq
    %v145 = vshrl.u32 %v144, 7
    %v146 = vsub.s32 3, %v145
    %v147 = vrot.slane %v49, %v146
    %v148 = vlaneseq
    %v149 = vshrl.u32 %v148, 7
    %v150 = vsub.s32 3, %v149
    %v151 = vrot.slane %v50, %v150
    %v152 = vmul.f32 %v143, %v147
    %v153 = vmul.f32 %v142, %v151
    %154 = vset.pattern.permute.xlu0 3
    %155 = vperm.xlu0 %154, %v48
    %v156 = vpop.permute.xlu0 %155
    %v158 = vmul.f32 %v152, %v156
    %v159 = vmul.f32 %v153, %v156
    %v160 = vadd.f32 %v135, %v158
    %v161 = vadd.f32 %v136, %v159
    %162 = vrot.lane.b32.xlu0 %v46, 127
    %v163 = vpop.permute.xlu0 %162
    %164 = vrot.lane.b32.xlu0 %v47, 127
    %v165 = vpop.permute.xlu0 %164
    %vm166 = vcmp.lt.s32.totalorder %v65, 127
    %v167 = vsel %vm166, %v163, %v165
    %v168 = vsel %vm166, %v165, %v163
    %v169 = vlaneseq
    %v170 = vshrl.u32 %v169, 7
    %v171 = vsub.s32 5, %v170
    %v172 = vrot.slane %v49, %v171
    %v173 = vlaneseq
    %v174 = vshrl.u32 %v173, 7
    %v175 = vsub.s32 5, %v174
    %v176 = vrot.slane %v50, %v175
    %v177 = vmul.f32 %v167, %v172
    %v178 = vmul.f32 %v168, %v176
    %179 = vset.pattern.permute.xlu0 5
    %180 = vperm.xlu0 %179, %v48
    %v181 = vpop.permute.xlu0 %180
    %v183 = vmul.f32 %v177, %v181
    %v184 = vmul.f32 %v178, %v181
    %v185 = vadd.f32 %v160, %v183
    %v186 = vadd.f32 %v161, %v184
    %187 = vrot.lane.b32.xlu0 %v46, 113
    %v188 = vpop.permute.xlu0 %187
    %189 = vrot.lane.b32.xlu0 %v47, 113
    %v190 = vpop.permute.xlu0 %189
    %vm191 = vcmp.lt.s32.totalorder %v65, 113
    %v192 = vsel %vm191, %v188, %v190
    %v193 = vsel %vm191, %v190, %v188
    %v194 = vlaneseq
    %v195 = vshrl.u32 %v194, 7
    %v196 = vsub.s32 6, %v195
    %v197 = vrot.slane %v49, %v196
    %v198 = vlaneseq
    %v199 = vshrl.u32 %v198, 7
    %v200 = vsub.s32 6, %v199
    %v201 = vrot.slane %v50, %v200
    %v202 = vmul.f32 %v192, %v197
    %v203 = vmul.f32 %v193, %v201
    %204 = vset.pattern.permute.xlu0 6
    %205 = vperm.xlu0 %204, %v48
    %v206 = vpop.permute.xlu0 %205
    %v208 = vmul.f32 %v202, %v206
    %v209 = vmul.f32 %v203, %v206
    %v210 = vadd.f32 %v185, %v208
    %v211 = vadd.f32 %v186, %v209
    %212 = vrot.lane.b32.xlu0 %v46, 112
    %v213 = vpop.permute.xlu0 %212
    %214 = vrot.lane.b32.xlu0 %v47, 112
    %v215 = vpop.permute.xlu0 %214
    %vm216 = vcmp.lt.s32.totalorder %v65, 112
    %v217 = vsel %vm216, %v213, %v215
    %v218 = vsel %vm216, %v215, %v213
    %v219 = vlaneseq
    %v220 = vshrl.u32 %v219, 7
    %v221 = vsub.s32 7, %v220
    %v222 = vrot.slane %v49, %v221
    %v223 = vlaneseq
    %v224 = vshrl.u32 %v223, 7
    %v225 = vsub.s32 7, %v224
    %v226 = vrot.slane %v50, %v225
    %v227 = vmul.f32 %v217, %v222
    %v228 = vmul.f32 %v218, %v226
    %229 = vset.pattern.permute.xlu0 7
    %230 = vperm.xlu0 %229, %v48
    %v231 = vpop.permute.xlu0 %230
    %v233 = vmul.f32 %v227, %v231
    %v234 = vmul.f32 %v228, %v231
    %v235 = vadd.f32 %v210, %v233
    %v236 = vadd.f32 %v211, %v234
    %237 = vrot.lane.b32.xlu0 %v46, 111
    %v238 = vpop.permute.xlu0 %237
    %239 = vrot.lane.b32.xlu0 %v47, 111
    %v240 = vpop.permute.xlu0 %239
    %vm241 = vcmp.lt.s32.totalorder %v65, 111
    %v242 = vsel %vm241, %v238, %v240
    %v243 = vsel %vm241, %v240, %v238
    %v244 = vlaneseq
    %v245 = vshrl.u32 %v244, 7
    %v246 = vsub.s32 0, %v245
    %v247 = vrot.slane %v51, %v246
    %v248 = vlaneseq
    %v249 = vshrl.u32 %v248, 7
    %v250 = vsub.s32 0, %v249
    %v251 = vrot.slane %v52, %v250
    %v252 = vmul.f32 %v242, %v247
    %v253 = vmul.f32 %v243, %v251
    %254 = vset.pattern.permute.xlu0 8
    %255 = vperm.xlu0 %254, %v48
    %v256 = vpop.permute.xlu0 %255
    %v258 = vmul.f32 %v252, %v256
    %v259 = vmul.f32 %v253, %v256
    %v260 = vadd.f32 %v235, %v258
    %v261 = vadd.f32 %v236, %v259
    %v262 = vld [vmem:[%s3] sm:$0xf]
    %v263 = vld [vmem:[%s3 + $0x4] sm:$0xf]
    %v264 = vpack.c.bf16 %v260, %v260
    %v265 = vpack.c.bf16 %v261, %v261
    %v266 = vld [vmem:[%s4] sm:$0xff]
    %v267 = vld [vmem:[%s4 + $0x8] sm:$0xff]
    %269 = vset.pattern.permute.xlu0 0
    %270 = vperm.xlu0 %269, %v266
    %v271 = vpop.permute.xlu0 %270
    %274 = vset.pattern.permute.xlu0 0
    %275 = vperm.xlu0 %274, %v267
    %v276 = vpop.permute.xlu0 %275
    %v280 = vunpack.c.l.b16 %v262
    %v281 = vunpack.c.l.b16 %v263
    %v282 = vpack.c.b16 %v281, %v280
    %vm283 = vcmask 64512
    %v285 = vsel %vm283, %v282, 0
    %vm287 = vcmask 1043456
    %v289 = vsel %vm287, %v264, 0
    %v292 = vsel %vm287, %v265, 0
    %294 = vmatprep.subr.bf16.mxu0 %v292
    %295 = vmatpush1.bf16.msra.mxu0 %v289
    %296 = vmatprep.subr.bf16.mxu0 0
    %297 = vmatpush1.bf16.msra.mxu0 0
    %298 = vmatprep.subr.bf16.mxu0 0
    %299 = vmatpush1.bf16.msra.mxu0 0
    %300 = vmatprep.subr.bf16.mxu0 0
    %301 = vmatpush1.bf16.msra.mxu0 0
    %302 = vmatprep.subr.bf16.mxu0 0
    %303 = vmatpush1.bf16.msra.mxu0 0
    %304 = vmatprep.subr.bf16.mxu0 0
    %305 = vmatpush1.bf16.msra.mxu0 0
    %306 = vmatprep.subr.bf16.mxu0 0
    %307 = vmatpush1.bf16.msra.mxu0 0
    %308 = vmatprep.subr.bf16.mxu0 0
    %309 = vmatpush1.bf16.msra.mxu0 0
    %310 = vmatprep.subr.bf16.mxu0 0
    %311 = vmatpush1.bf16.msra.mxu0 0
    %312 = vmatprep.subr.bf16.mxu0 0
    %313 = vmatpush1.bf16.msra.mxu0 0
    %314 = vmatprep.subr.bf16.mxu0 0
    %315 = vmatpush1.bf16.msra.mxu0 0
    %316 = vmatprep.subr.bf16.mxu0 0
    %317 = vmatpush1.bf16.msra.mxu0 0
    %318 = vmatprep.subr.bf16.mxu0 0
    %319 = vmatpush1.bf16.msra.mxu0 0
    %320 = vmatprep.subr.bf16.mxu0 0
    %321 = vmatpush1.bf16.msra.mxu0 0
    %322 = vmatprep.subr.bf16.mxu0 0
    %323 = vmatpush1.bf16.msra.mxu0 0
    %324 = vmatprep.subr.bf16.mxu0 0
    %325 = vmatpush1.bf16.msra.mxu0 0
    %326 = vmatprep.mubr.bf16.mxu0 0
    %327 = vmatmul.mubr.bf16.gmra.mrb[0].mxu0 %v285
    %v328 = vpop.f32.mrb[0].mxu0
    %v329 = vadd.f32 %v271, %v328
    %v330 = vpop.f32.mrb[0].mxu0
    %v331 = vadd.f32 %v271, %v330
    %v332 = vpop.f32.mrb[0].mxu0
    %v333 = vadd.f32 %v276, %v332
    %v334 = vpop.f32.mrb[0].mxu0
    %v335 = vadd.f32 %v276, %v334
    %336 = vdwg.mxu0
    %337 = vst [vmem:[#allocation7] sm:$0xff] %v329
    %338 = vst [vmem:[#allocation7 + $0x8] sm:$0xff] %v331
    %339 = vst [vmem:[#allocation7 + $0x10] sm:$0xff] %v333
    %340 = vst [vmem:[#allocation7 + $0x18] sm:$0xff] %v335
    // Predicated region
    $region30: #{tpu_custom_call.1} parent=1 // pred_check
      _
    $region31: #{tpu_custom_call.1} parent=1 // pred_check_branch
      %342 = sbr.rel (0) target = $region33
    $region32: #{tpu_custom_call.1} parent=1 // pred_region
      %s344 = ssub.s32 512, 512
      %345 = vsyncadd [#allocation4], %s344
      %s346 = sshll.u32 [#allocation7], 4
      %s347 = int_to_ptr.vmem [resolvable:$true] %s346
      %352 = dma.vmem_to_hbm [thread:$0]  %s347, 512, %s5, [#allocation4], 256, 256, 16
    $region33: #{tpu_custom_call.1} parent=1 // pred_fallthru
      _
    // Predicated region
    $region34: #{tpu_custom_call.1} parent=1 // pred_check
      _
    $region35: #{tpu_custom_call.1} parent=1 // pred_check_branch
      %354 = sbr.rel (0) target = $region37
    $region36: #{tpu_custom_call.1} parent=1 // pred_region
      %355 = dma.done [#allocation4], 512
    $region37: #{tpu_custom_call.1} parent=1 // pred_fallthru
      _
    %356 = vsyncpa [#allocation3], 1
    %357 = vsyncpa [#allocation6], 1
    %358 = vsyncpa [#allocation4], 1

</llo_original>
